<compile_context>
chip_gen: v7x
topology: tpu7x:2x2x1
jax: 0.10.0
libtpu: 0.0.40
codegen_flags: <defaults>
</compile_context>

<pallas_src>
import functools

import jax
import jax.numpy as jnp
from jax.experimental import pallas as pl
from jax.experimental.pallas import tpu as pltpu

INPUT_SIZE = 128
HIDDEN_SIZE = 32
ENC_DIMS = [INPUT_SIZE, 64, 48, HIDDEN_SIZE]   # encoder Linear chain
DEC_DIMS = [HIDDEN_SIZE, 48, 64, INPUT_SIZE]   # decoder Linear chain
NUM_LAYERS = 6
RELU_LAYERS = (0, 1, 3, 4)                     # layers followed by ReLU
Z_LAYER = 2                                    # encoder output (latent)


def _round_up(n, m):
    return ((n + m - 1) // m) * m


def _ae_kernel(x_ref, w_ref, b_ref, xrec_ref, z_ref):
    """Whole autoencoder MLP for one batch tile, entirely in VMEM.

    x_ref:  (bb, 128)  f32   activation tile
    w_ref:  (6, 128, 128) bf16  zero-padded, pre-transposed weights (resident)
    b_ref:  (6, 1, 128)   f32   zero-padded biases (resident)
    """
    h = x_ref[...]                                   # f32
    for layer in range(NUM_LAYERS):
        # bf16 x bf16 -> f32 accumulate on the MXU; full-lane (bb,128)@(128,128).
        h = jnp.dot(h.astype(jnp.bfloat16), w_ref[layer],
                    preferred_element_type=jnp.float32)
        h = h + b_ref[layer]                         # f32 elementwise (VPU)
        if layer in RELU_LAYERS:
            h = jnp.maximum(h, 0.0)
        elif layer == Z_LAYER:
            # Padded lanes [32:128] are exactly zero (zero weight cols / bias),
            # so the true latent is the first HIDDEN_SIZE lanes.
            z_ref[...] = h[:, :HIDDEN_SIZE].astype(z_ref.dtype)
        else:  # final layer
            xrec_ref[...] = jax.nn.sigmoid(h).astype(xrec_ref.dtype)


def init_params(key):
    """PyTorch-style Linear init U(-1/sqrt(fan_in), +), packed & zero-padded.

    Returns:
      w_packed: (6, 128, 128) bf16 — weight k stored transposed (in, out) in the
                top-left (fan_in, fan_out) block, zeros elsewhere.
      b_packed: (6, 1, 128)   f32  — bias k in the first fan_out lanes, zeros after.
    """
    dims = list(zip(ENC_DIMS[:-1], ENC_DIMS[1:])) + list(zip(DEC_DIMS[:-1], DEC_DIMS[1:]))
    ws, bs = [], []
    for (fan_in, fan_out) in dims:
        key, kw, kb = jax.random.split(key, 3)
        bound = 1.0 / jnp.sqrt(jnp.float32(fan_in))
        w = jax.random.uniform(kw, (fan_in, fan_out), jnp.float32, -bound, bound)
        b = jax.random.uniform(kb, (fan_out,), jnp.float32, -bound, bound)
        w_pad = jnp.zeros((INPUT_SIZE, INPUT_SIZE), jnp.float32).at[:fan_in, :fan_out].set(w)
        b_pad = jnp.zeros((1, INPUT_SIZE), jnp.float32).at[0, :fan_out].set(b)
        ws.append(w_pad)
        bs.append(b_pad)
    return jnp.stack(ws).astype(jnp.bfloat16), jnp.stack(bs)


@functools.partial(jax.jit, static_argnames=("block_b",))
def probability_autoencoder_fwd(x, w_packed, b_packed, block_b=2048):
    B, F = x.shape
    assert F == INPUT_SIZE

    # Batch tile size:
    #  - B <= 8: one tile covering the whole (possibly odd-sized) batch dim.
    #  - else: <= block_b rows, but also <= ceil(B/2) rounded up to 8 sublanes
    #    so the grid has >= 2 steps (v7x: both TensorCores get work).
    if B <= 8:
        bb = B
    else:
        bb = min(block_b, _round_up(pl.cdiv(B, 2), 8))
    grid = (pl.cdiv(B, bb),)          # ragged last tile handled by Pallas masking
    rows_padded = grid[0] * bb        # compute rows incl. masked padding

    # x / outputs tiled over batch; packed params are block-invariant (resident).
    x_spec = pl.BlockSpec((bb, INPUT_SIZE), lambda i: (i, 0))
    w_spec = pl.BlockSpec(w_packed.shape, lambda i: (0, 0, 0))
    b_spec = pl.BlockSpec(b_packed.shape, lambda i: (0, 0, 0))
    out_specs = (
        pl.BlockSpec((bb, INPUT_SIZE), lambda i: (i, 0)),    # x_reconstructed
        pl.BlockSpec((bb, HIDDEN_SIZE), lambda i: (i, 0)),   # z
    )
    out_shape = (
        jax.ShapeDtypeStruct((B, INPUT_SIZE), jnp.float32),
        jax.ShapeDtypeStruct((B, HIDDEN_SIZE), jnp.float32),
    )

    cost = pl.CostEstimate(
        flops=2 * rows_padded * NUM_LAYERS * INPUT_SIZE * INPUT_SIZE,
        transcendentals=rows_padded * INPUT_SIZE,            # sigmoid, final layer
        bytes_accessed=(4 * B * (2 * INPUT_SIZE + HIDDEN_SIZE)   # x, x_rec, z (f32)
                        + 2 * w_packed.size                      # bf16 weights
                        + 4 * b_packed.size),                    # f32 biases
    )

    x_rec, z = pl.pallas_call(
        _ae_kernel,
        grid_spec=pl.GridSpec(
            grid=grid,
            in_specs=[x_spec, w_spec, b_spec],
            out_specs=out_specs,
        ),
        out_shape=out_shape,
        compiler_params=pltpu.CompilerParams(
            dimension_semantics=("parallel",),
            vmem_limit_bytes=32 * 1024 * 1024,
        ),
        cost_estimate=cost,
    )(x, w_packed, b_packed)
    return x_rec, z


def reference_fwd(x, w_packed, b_packed):
    """Pure-JAX reference with the identical precision recipe (bf16 in, f32 acc)."""
    h = x
    z = None
    for layer in range(NUM_LAYERS):
        h = jnp.dot(h.astype(jnp.bfloat16), w_packed[layer],
                    preferred_element_type=jnp.float32) + b_packed[layer]
        if layer in RELU_LAYERS:
            h = jnp.maximum(h, 0.0)
        elif layer == Z_LAYER:
            z = h[:, :HIDDEN_SIZE]
    x_rec = jax.nn.sigmoid(h)
    return x_rec, z


if __name__ == "__main__":
    key = jax.random.PRNGKey(0)
    kx, kp = jax.random.split(key)

    batch = 10  # exercises the 2-step grid and the ragged (masked) last tile
    x = jax.random.uniform(kx, (batch, INPUT_SIZE), jnp.float32)  # probs in [0,1)
    w_packed, b_packed = init_params(kp)

    x_rec, z = probability_autoencoder_fwd(x, w_packed, b_packed)
    jax.block_until_ready((x_rec, z))

    # sanity check against a pure-JAX reference using the same bf16/f32 recipe
    x_rec_ref, z_ref = reference_fwd(x, w_packed, b_packed)
    assert x_rec.shape == (batch, INPUT_SIZE) and z.shape == (batch, HIDDEN_SIZE)
    assert jnp.allclose(x_rec, x_rec_ref, atol=2e-3, rtol=2e-3)
    assert jnp.allclose(z, z_ref, atol=2e-3, rtol=2e-3)

    print("KERNEL_OK")
</pallas_src>

<mosaic_0001>
module attributes {stable_mosaic.version = 11 : i64} {
  func.func @_ae_kernel(%arg0: i32, %arg1: memref<8x128xf32, #tpu.memory_space<vmem>>, %arg2: memref<6x128x128xbf16, #tpu.memory_space<vmem>>, %arg3: memref<6x1x128xf32, #tpu.memory_space<vmem>>, %arg4: memref<8x128xf32, #tpu.memory_space<vmem>>, %arg5: memref<8x32xf32, #tpu.memory_space<vmem>>) attributes {dimension_semantics = [#tpu.dimension_semantics<parallel>], iteration_bounds = array<i64: 2>, scalar_prefetch = 0 : i64, scratch_operands = 0 : i64, tpu.core_type = #tpu.core_type<tc>, window_params = [{transform_indices = @transform_0, window_bounds = array<i64: 8, 128>}, {pipeline_mode = #tpu.pipeline_mode<synchronous>, transform_indices = @transform_1, window_bounds = array<i64: 6, 128, 128>}, {pipeline_mode = #tpu.pipeline_mode<synchronous>, transform_indices = @transform_2, window_bounds = array<i64: 6, 1, 128>}, {transform_indices = @transform_3, window_bounds = array<i64: 8, 128>}, {transform_indices = @transform_4, window_bounds = array<i64: 8, 32>}]} {
    %c0 = arith.constant 0 : index
    %c0_0 = arith.constant 0 : index
    %0 = vector.load %arg1[%c0, %c0_0] : memref<8x128xf32, #tpu.memory_space<vmem>>, vector<8x128xf32>
    %1 = arith.truncf %0 : vector<8x128xf32> to vector<8x128xbf16>
    %c0_1 = arith.constant 0 : index
    %c0_2 = arith.constant 0 : index
    %c0_3 = arith.constant 0 : index
    %2 = vector.load %arg2[%c0_1, %c0_2, %c0_3] : memref<6x128x128xbf16, #tpu.memory_space<vmem>>, vector<1x128x128xbf16>
    %3 = vector.shape_cast %2 : vector<1x128x128xbf16> to vector<128x128xbf16>
    %cst = arith.constant dense<0.000000e+00> : vector<8x128xf32>
    %4 = tpu.matmul %1, %3, %cst {dimension_numbers = #tpu.dot_dimension_numbers<[1], [0], [0], [1], [0, 0, 1, 1], [], []>} : vector<8x128xbf16>, vector<128x128xbf16>, vector<8x128xf32> -> vector<8x128xf32>
    %c0_4 = arith.constant 0 : index
    %c0_5 = arith.constant 0 : index
    %c0_6 = arith.constant 0 : index
    %5 = vector.load %arg3[%c0_4, %c0_5, %c0_6] : memref<6x1x128xf32, #tpu.memory_space<vmem>>, vector<1x1x128xf32>
    %6 = vector.shape_cast %5 : vector<1x1x128xf32> to vector<1x128xf32>
    %7 = vector.broadcast %6 : vector<1x128xf32> to vector<8x128xf32>
    %8 = arith.addf %4, %7 : vector<8x128xf32>
    %cst_7 = arith.constant 0.000000e+00 : f32
    %9 = vector.broadcast %cst_7 : f32 to vector<8x128xf32>
    %10 = arith.maximumf %8, %9 : vector<8x128xf32>
    %11 = arith.truncf %10 : vector<8x128xf32> to vector<8x128xbf16>
    %c1 = arith.constant 1 : index
    %c0_8 = arith.constant 0 : index
    %c0_9 = arith.constant 0 : index
    %12 = vector.load %arg2[%c1, %c0_8, %c0_9] : memref<6x128x128xbf16, #tpu.memory_space<vmem>>, vector<1x128x128xbf16>
    %13 = vector.shape_cast %12 : vector<1x128x128xbf16> to vector<128x128xbf16>
    %cst_10 = arith.constant dense<0.000000e+00> : vector<8x128xf32>
    %14 = tpu.matmul %11, %13, %cst_10 {dimension_numbers = #tpu.dot_dimension_numbers<[1], [0], [0], [1], [0, 0, 1, 1], [], []>} : vector<8x128xbf16>, vector<128x128xbf16>, vector<8x128xf32> -> vector<8x128xf32>
    %c1_11 = arith.constant 1 : index
    %c0_12 = arith.constant 0 : index
    %c0_13 = arith.constant 0 : index
    %15 = vector.load %arg3[%c1_11, %c0_12, %c0_13] : memref<6x1x128xf32, #tpu.memory_space<vmem>>, vector<1x1x128xf32>
    %16 = vector.shape_cast %15 : vector<1x1x128xf32> to vector<1x128xf32>
    %17 = vector.broadcast %16 : vector<1x128xf32> to vector<8x128xf32>
    %18 = arith.addf %14, %17 : vector<8x128xf32>
    %cst_14 = arith.constant 0.000000e+00 : f32
    %19 = vector.broadcast %cst_14 : f32 to vector<8x128xf32>
    %20 = arith.maximumf %18, %19 : vector<8x128xf32>
    %21 = arith.truncf %20 : vector<8x128xf32> to vector<8x128xbf16>
    %c2 = arith.constant 2 : index
    %c0_15 = arith.constant 0 : index
    %c0_16 = arith.constant 0 : index
    %22 = vector.load %arg2[%c2, %c0_15, %c0_16] : memref<6x128x128xbf16, #tpu.memory_space<vmem>>, vector<1x128x128xbf16>
    %23 = vector.shape_cast %22 : vector<1x128x128xbf16> to vector<128x128xbf16>
    %cst_17 = arith.constant dense<0.000000e+00> : vector<8x128xf32>
    %24 = tpu.matmul %21, %23, %cst_17 {dimension_numbers = #tpu.dot_dimension_numbers<[1], [0], [0], [1], [0, 0, 1, 1], [], []>} : vector<8x128xbf16>, vector<128x128xbf16>, vector<8x128xf32> -> vector<8x128xf32>
    %c2_18 = arith.constant 2 : index
    %c0_19 = arith.constant 0 : index
    %c0_20 = arith.constant 0 : index
    %25 = vector.load %arg3[%c2_18, %c0_19, %c0_20] : memref<6x1x128xf32, #tpu.memory_space<vmem>>, vector<1x1x128xf32>
    %26 = vector.shape_cast %25 : vector<1x1x128xf32> to vector<1x128xf32>
    %27 = vector.broadcast %26 : vector<1x128xf32> to vector<8x128xf32>
    %28 = arith.addf %24, %27 : vector<8x128xf32>
    %29 = vector.extract_strided_slice %28 {offsets = [0, 0], sizes = [8, 32], strides = [1, 1]} : vector<8x128xf32> to vector<8x32xf32>
    %c0_21 = arith.constant 0 : index
    %c0_22 = arith.constant 0 : index
    %30 = vector.load %arg5[%c0_21, %c0_22] : memref<8x32xf32, #tpu.memory_space<vmem>>, vector<8x32xf32>
    tpu.vector_store %arg5[%c0_21, %c0_22], %29 {strides = array<i32>} : memref<8x32xf32, #tpu.memory_space<vmem>>, vector<8x32xf32>,
    %31 = arith.truncf %28 : vector<8x128xf32> to vector<8x128xbf16>
    %c3 = arith.constant 3 : index
    %c0_23 = arith.constant 0 : index
    %c0_24 = arith.constant 0 : index
    %32 = vector.load %arg2[%c3, %c0_23, %c0_24] : memref<6x128x128xbf16, #tpu.memory_space<vmem>>, vector<1x128x128xbf16>
    %33 = vector.shape_cast %32 : vector<1x128x128xbf16> to vector<128x128xbf16>
    %cst_25 = arith.constant dense<0.000000e+00> : vector<8x128xf32>
    %34 = tpu.matmul %31, %33, %cst_25 {dimension_numbers = #tpu.dot_dimension_numbers<[1], [0], [0], [1], [0, 0, 1, 1], [], []>} : vector<8x128xbf16>, vector<128x128xbf16>, vector<8x128xf32> -> vector<8x128xf32>
    %c3_26 = arith.constant 3 : index
    %c0_27 = arith.constant 0 : index
    %c0_28 = arith.constant 0 : index
    %35 = vector.load %arg3[%c3_26, %c0_27, %c0_28] : memref<6x1x128xf32, #tpu.memory_space<vmem>>, vector<1x1x128xf32>
    %36 = vector.shape_cast %35 : vector<1x1x128xf32> to vector<1x128xf32>
    %37 = vector.broadcast %36 : vector<1x128xf32> to vector<8x128xf32>
    %38 = arith.addf %34, %37 : vector<8x128xf32>
    %cst_29 = arith.constant 0.000000e+00 : f32
    %39 = vector.broadcast %cst_29 : f32 to vector<8x128xf32>
    %40 = arith.maximumf %38, %39 : vector<8x128xf32>
    %41 = arith.truncf %40 : vector<8x128xf32> to vector<8x128xbf16>
    %c4 = arith.constant 4 : index
    %c0_30 = arith.constant 0 : index
    %c0_31 = arith.constant 0 : index
    %42 = vector.load %arg2[%c4, %c0_30, %c0_31] : memref<6x128x128xbf16, #tpu.memory_space<vmem>>, vector<1x128x128xbf16>
    %43 = vector.shape_cast %42 : vector<1x128x128xbf16> to vector<128x128xbf16>
    %cst_32 = arith.constant dense<0.000000e+00> : vector<8x128xf32>
    %44 = tpu.matmul %41, %43, %cst_32 {dimension_numbers = #tpu.dot_dimension_numbers<[1], [0], [0], [1], [0, 0, 1, 1], [], []>} : vector<8x128xbf16>, vector<128x128xbf16>, vector<8x128xf32> -> vector<8x128xf32>
    %c4_33 = arith.constant 4 : index
    %c0_34 = arith.constant 0 : index
    %c0_35 = arith.constant 0 : index
    %45 = vector.load %arg3[%c4_33, %c0_34, %c0_35] : memref<6x1x128xf32, #tpu.memory_space<vmem>>, vector<1x1x128xf32>
    %46 = vector.shape_cast %45 : vector<1x1x128xf32> to vector<1x128xf32>
    %47 = vector.broadcast %46 : vector<1x128xf32> to vector<8x128xf32>
    %48 = arith.addf %44, %47 : vector<8x128xf32>
    %cst_36 = arith.constant 0.000000e+00 : f32
    %49 = vector.broadcast %cst_36 : f32 to vector<8x128xf32>
    %50 = arith.maximumf %48, %49 : vector<8x128xf32>
    %51 = arith.truncf %50 : vector<8x128xf32> to vector<8x128xbf16>
    %c5 = arith.constant 5 : index
    %c0_37 = arith.constant 0 : index
    %c0_38 = arith.constant 0 : index
    %52 = vector.load %arg2[%c5, %c0_37, %c0_38] : memref<6x128x128xbf16, #tpu.memory_space<vmem>>, vector<1x128x128xbf16>
    %53 = vector.shape_cast %52 : vector<1x128x128xbf16> to vector<128x128xbf16>
    %cst_39 = arith.constant dense<0.000000e+00> : vector<8x128xf32>
    %54 = tpu.matmul %51, %53, %cst_39 {dimension_numbers = #tpu.dot_dimension_numbers<[1], [0], [0], [1], [0, 0, 1, 1], [], []>} : vector<8x128xbf16>, vector<128x128xbf16>, vector<8x128xf32> -> vector<8x128xf32>
    %c5_40 = arith.constant 5 : index
    %c0_41 = arith.constant 0 : index
    %c0_42 = arith.constant 0 : index
    %55 = vector.load %arg3[%c5_40, %c0_41, %c0_42] : memref<6x1x128xf32, #tpu.memory_space<vmem>>, vector<1x1x128xf32>
    %56 = vector.shape_cast %55 : vector<1x1x128xf32> to vector<1x128xf32>
    %57 = vector.broadcast %56 : vector<1x128xf32> to vector<8x128xf32>
    %58 = arith.addf %54, %57 : vector<8x128xf32>
    %59 = arith.negf %58 : vector<8x128xf32>
    %60 = math.exp %59 : vector<8x128xf32>
    %cst_43 = arith.constant 1.000000e+00 : f32
    %61 = vector.broadcast %cst_43 : f32 to vector<8x128xf32>
    %62 = arith.addf %61, %60 : vector<8x128xf32>
    %63 = arith.divf %61, %62 : vector<8x128xf32>
    %c0_44 = arith.constant 0 : index
    %c0_45 = arith.constant 0 : index
    %64 = vector.load %arg4[%c0_44, %c0_45] : memref<8x128xf32, #tpu.memory_space<vmem>>, vector<8x128xf32>
    tpu.vector_store %arg4[%c0_44, %c0_45], %63 {strides = array<i32>} : memref<8x128xf32, #tpu.memory_space<vmem>>, vector<8x128xf32>,
    return
  }
  func.func @transform_0(%arg0: i32) -> (i32, i32) {
    %c0_i32 = arith.constant 0 : i32
    %c0_i32_0 = arith.constant 0 : i32
    return %arg0, %c0_i32 : i32, i32
  }
  func.func @transform_1(%arg0: i32) -> (i32, i32, i32) {
    %c0_i32 = arith.constant 0 : i32
    %c0_i32_0 = arith.constant 0 : i32
    %c0_i32_1 = arith.constant 0 : i32
    %c0_i32_2 = arith.constant 0 : i32
    return %c0_i32, %c0_i32_0, %c0_i32_1 : i32, i32, i32
  }
  func.func @transform_2(%arg0: i32) -> (i32, i32, i32) {
    %c0_i32 = arith.constant 0 : i32
    %c0_i32_0 = arith.constant 0 : i32
    %c0_i32_1 = arith.constant 0 : i32
    %c0_i32_2 = arith.constant 0 : i32
    return %c0_i32, %c0_i32_0, %c0_i32_1 : i32, i32, i32
  }
  func.func @transform_3(%arg0: i32) -> (i32, i32) {
    %c0_i32 = arith.constant 0 : i32
    %c0_i32_0 = arith.constant 0 : i32
    return %arg0, %c0_i32 : i32, i32
  }
  func.func @transform_4(%arg0: i32) -> (i32, i32) {
    %c0_i32 = arith.constant 0 : i32
    %c0_i32_0 = arith.constant 0 : i32
    return %arg0, %c0_i32 : i32, i32
  }
}

</mosaic_0001>

<llo_original>
// kernel: probability_autoencoder_fwd.1
$region0: #{probability_autoencoder_fwd.1}
  #allocation0 [shape = 'u32[]', space=smem, size = 0x4, offset = 0x4, fixed_abs, tag = 'smem constant byte address 0x4 - core index']
  #allocation1 [shape = 'u32[144,128]{1,0:T(1,128)}', space=vmem, size = 0x12000, scoped, tag = 'internal scratch']
  %s0 = inlined_call_operand.hbm [shape: f32[10,128], index: 0, kind: input, shape index: {}]
  %s1 = inlined_call_operand.hbm [shape: bf16[6,128,128], index: 1, kind: input, shape index: {}]
  %s2 = inlined_call_operand.vmem [shape: f32[6,1,128], index: 2, kind: input, shape index: {}]
  %s3 = inlined_call_operand.hbm [shape: f32[10,128], index: 3, kind: output, shape index: {0}]
  %s4 = inlined_call_operand.hbm [shape: f32[10,32], index: 4, kind: output, shape index: {1}]
  %5 = xla_tuple %s3, %s4
  %s6 = sld [smem:[#allocation0]]
  $region61: #{probability_autoencoder_fwd.1} parent=0
    _
  %s8 = ssub.s32 1, %s6
  %s9 = scalar_select 0, %s8, %s6
  $region1: #{probability_autoencoder_fwd.1} parent=0
    #allocation2 [shape = 'u8[8192]{0}', space=vmem, size = 0x2000, scoped, tag = 'input window, operand 0']
    #allocation3 [shape = 's32[2]{0}', space=sflag, size = 0x8, scoped, tag = 'scoped memory for probability_autoencoder_fwd.1']
    #allocation4 [shape = 's32[2]{0}', space=sflag, size = 0x8, scoped, tag = 'scoped memory for probability_autoencoder_fwd.1']
    #allocation5 [shape = 'u8[196608]{0}', space=vmem, size = 0x30000, scoped, tag = 'input window, operand 1, single buffered']
    #allocation6 [shape = 's32[1]{0}', space=sflag, size = 0x4, scoped, tag = 'scoped memory for probability_autoencoder_fwd.1']
    #allocation7 [shape = 'u8[8192]{0}', space=vmem, size = 0x2000, scoped, tag = 'output window, operand 0']
    #allocation8 [shape = 'u8[8192]{0}', space=vmem, size = 0x2000, scoped, tag = 'output window, operand 1']
    #allocation9 [shape = 's32[2]{0}', space=sflag, size = 0x8, scoped, tag = 'scoped memory for probability_autoencoder_fwd.1']
    %10 = vsyncpa [#allocation3], 0
    %s11 = scalar_lea.sflag [#allocation3], 1
    %12 = vsyncpa %s11, 0
    %13 = vsyncpa [#allocation6], 0
    %14 = vsyncpa [#allocation4], 0
    %s15 = scalar_lea.sflag [#allocation4], 1
    %16 = vsyncpa %s15, 0
    %17 = vsyncpa [#allocation9], 0
    %s18 = scalar_lea.sflag [#allocation9], 1
    %19 = vsyncpa %s18, 0
    loop: start=0, step=1, limit=4
    $region2: #{probability_autoencoder_fwd.1} parent=1 // loop_pre_header
      _
    $region3: #{probability_autoencoder_fwd.1} parent=1 // loop_header
      %s21 = sphi 0, %s25
      %p22 = scmp.ge.s32.totalorder %s21, 4
      %s31 = sphi 0, %s33
      %s34 = sphi 0, %s31
      %s35 = sphi 0, %s34
      %s51 = sphi 0, %s35
      %s55 = sphi 0, %s55
      %s57 = sphi 0, %s55
      %s58 = sphi 0, %s57
      %s72 = sphi 0, %s58
      %s76 = sphi 0, %s76
      %s78 = sphi 0, %s76
      %s79 = sphi 0, %s78
      %s93 = sphi 0, %s79
      %s99 = sphi 0, %s101
      %s102 = sphi 0, %s99
      %s103 = sphi 0, %s102
      %s119 = sphi 0, %s103
      %s125 = sphi 0, %s127
      %s128 = sphi 0, %s125
      %s129 = sphi 0, %s128
      %s145 = sphi 0, %s129
    $region4: #{probability_autoencoder_fwd.1} parent=1 // loop_header_branch
      %24 = sbr.rel (%p22) target = $region8
    $region5: #{probability_autoencoder_fwd.1} parent=1 // loop_body
      %s26 = ssub.s32 %s21, 1
      %s27 = ssub.s32 %s21, 2
      %s28 = sadd.s32 %s21, 1
      %s29 = ssub.s32 %s21, %s28
      %p30 = scmp.eq.s32.totalorder %s29, 0
      %s32 = sadd.s32 %s31, 1
      %s33 = scalar_select %p30, %s31, %s32
      %p36 = pneg %p30
      %p37 = scmp.eq.s32.totalorder %s21, 1
      %p38 = por %p36, %p37
      %p39 = scmp.ne.s32.totalorder %s31, %s34
      %p40 = scmp.eq.s32.totalorder %s21, 0
      %p41 = por %p39, %p40
      %p42 = scmp.ne.s32.totalorder %s31, %s34
      %p43 = scmp.eq.s32.totalorder %s26, 1
      %p44 = por %p42, %p43
      %p45 = scmp.ne.s32.totalorder %s34, %s35
      %p46 = scmp.eq.s32.totalorder %s26, 0
      %p47 = por %p45, %p46
      %p48 = scmp.ne.s32.totalorder %s34, %s35
      %p49 = scmp.eq.s32.totalorder %s27, 1
      %p50 = por %p48, %p49
      %p52 = scmp.ne.s32.totalorder %s35, %s51
      %p53 = scmp.eq.s32.totalorder %s27, 0
      %p54 = por %p52, %p53
      %s56 = sadd.s32 %s55, 1
      %p59 = scmp.eq.s32.totalorder %s21, 1
      %p60 = scmp.ne.s32.totalorder %s55, %s57
      %p61 = scmp.eq.s32.totalorder %s21, 0
      %p62 = por %p60, %p61
      %p63 = scmp.ne.s32.totalorder %s55, %s57
      %p64 = scmp.eq.s32.totalorder %s26, 1
      %p65 = por %p63, %p64
      %p66 = scmp.ne.s32.totalorder %s57, %s58
      %p67 = scmp.eq.s32.totalorder %s26, 0
      %p68 = por %p66, %p67
      %p69 = scmp.ne.s32.totalorder %s57, %s58
      %p70 = scmp.eq.s32.totalorder %s27, 1
      %p71 = por %p69, %p70
      %p73 = scmp.ne.s32.totalorder %s58, %s72
      %p74 = scmp.eq.s32.totalorder %s27, 0
      %p75 = por %p73, %p74
      %s77 = sadd.s32 %s76, 1
      %p80 = scmp.eq.s32.totalorder %s21, 1
      %p81 = scmp.ne.s32.totalorder %s76, %s78
      %p82 = scmp.eq.s32.totalorder %s21, 0
      %p83 = por %p81, %p82
      %p84 = scmp.ne.s32.totalorder %s76, %s78
      %p85 = scmp.eq.s32.totalorder %s26, 1
      %p86 = por %p84, %p85
      %p87 = scmp.ne.s32.totalorder %s78, %s79
      %p88 = scmp.eq.s32.totalorder %s26, 0
      %p89 = por %p87, %p88
      %p90 = scmp.ne.s32.totalorder %s78, %s79
      %p91 = scmp.eq.s32.totalorder %s27, 1
      %p92 = por %p90, %p91
      %p94 = scmp.ne.s32.totalorder %s79, %s93
      %p95 = scmp.eq.s32.totalorder %s27, 0
      %p96 = por %p94, %p95
      %s97 = ssub.s32 %s21, %s28
      %p98 = scmp.eq.s32.totalorder %s97, 0
      %s100 = sadd.s32 %s99, 1
      %s101 = scalar_select %p98, %s99, %s100
      %p104 = pneg %p98
      %p105 = scmp.eq.s32.totalorder %s21, 1
      %p106 = por %p104, %p105
      %p107 = scmp.ne.s32.totalorder %s99, %s102
      %p108 = scmp.eq.s32.totalorder %s21, 0
      %p109 = por %p107, %p108
      %p110 = scmp.ne.s32.totalorder %s99, %s102
      %p111 = scmp.eq.s32.totalorder %s26, 1
      %p112 = por %p110, %p111
      %p113 = scmp.ne.s32.totalorder %s102, %s103
      %p114 = scmp.eq.s32.totalorder %s26, 0
      %p115 = por %p113, %p114
      %p116 = scmp.ne.s32.totalorder %s102, %s103
      %p117 = scmp.eq.s32.totalorder %s27, 1
      %p118 = por %p116, %p117
      %p120 = scmp.ne.s32.totalorder %s103, %s119
      %p121 = scmp.eq.s32.totalorder %s27, 0
      %p122 = por %p120, %p121
      %s123 = ssub.s32 %s21, %s28
      %p124 = scmp.eq.s32.totalorder %s123, 0
      %s126 = sadd.s32 %s125, 1
      %s127 = scalar_select %p124, %s125, %s126
      %p130 = pneg %p124
      %p131 = scmp.eq.s32.totalorder %s21, 1
      %p132 = por %p130, %p131
      %p133 = scmp.ne.s32.totalorder %s125, %s128
      %p134 = scmp.eq.s32.totalorder %s21, 0
      %p135 = por %p133, %p134
      %p136 = scmp.ne.s32.totalorder %s125, %s128
      %p137 = scmp.eq.s32.totalorder %s26, 1
      %p138 = por %p136, %p137
      %p139 = scmp.ne.s32.totalorder %s128, %s129
      %p140 = scmp.eq.s32.totalorder %s26, 0
      %p141 = por %p139, %p140
      %p142 = scmp.ne.s32.totalorder %s128, %s129
      %p143 = scmp.eq.s32.totalorder %s27, 1
      %p144 = por %p142, %p143
      %p146 = scmp.ne.s32.totalorder %s129, %s145
      %p147 = scmp.eq.s32.totalorder %s27, 0
      %p148 = por %p146, %p147
      %p149 = scmp.le.s32.totalorder 1, %s21
      %p150 = scmp.lt.s32.totalorder %s21, 3
      %p151 = pnand %p149, %p150
      %p152 = pneg %p151
      // Predicated region
      $region9: #{probability_autoencoder_fwd.1} parent=5 // pred_check
        _
      $region10: #{probability_autoencoder_fwd.1} parent=5 // pred_check_branch
        %154 = sbr.rel (%p151) target = $region12
      $region11: #{probability_autoencoder_fwd.1} parent=5 // pred_region
        %s155 = ssub.s32 %s21, 1
        // Predicated region
        $region13: #{probability_autoencoder_fwd.1} parent=11 // pred_check
          %p156 = pneg %p68
        $region14: #{probability_autoencoder_fwd.1} parent=11 // pred_check_branch
          %158 = sbr.rel (%p156) target = $region16
        $region15: #{probability_autoencoder_fwd.1} parent=11 // pred_region
          %s160 = ssub.s32 6144, 6144
          %161 = vsyncadd [#allocation6], %s160
          %s162 = sshll.u32 [#allocation5], 4
          %s163 = int_to_ptr.vmem [resolvable:$true] %s162
          %168 = dma.hbm_to_vmem [thread:$0]  %s1, 6144, %s163, [#allocation6], 64, 64, 4
        $region16: #{probability_autoencoder_fwd.1} parent=11 // pred_fallthru
          _
        // Predicated region
        $region17: #{probability_autoencoder_fwd.1} parent=11 // pred_check
          %p169 = pneg %p89
        $region18: #{probability_autoencoder_fwd.1} parent=11 // pred_check_branch
          %171 = sbr.rel (%p169) target = $region20
        $region19: #{probability_autoencoder_fwd.1} parent=11 // pred_region
          _
        $region20: #{probability_autoencoder_fwd.1} parent=11 // pred_fallthru
          _
      $region12: #{probability_autoencoder_fwd.1} parent=5 // pred_fallthru
        _
      %p172 = scmp.lt.s32.totalorder %s21, 2
      // Predicated region
      $region21: #{probability_autoencoder_fwd.1} parent=5 // pred_check
        %p173 = pneg %p172
      $region22: #{probability_autoencoder_fwd.1} parent=5 // pred_check_branch
        %175 = sbr.rel (%p173) target = $region24
      $region23: #{probability_autoencoder_fwd.1} parent=5 // pred_region
        // Predicated region
        $region25: #{probability_autoencoder_fwd.1} parent=23 // pred_check
          %p176 = pneg %p41
        $region26: #{probability_autoencoder_fwd.1} parent=23 // pred_check_branch
          %178 = sbr.rel (%p176) target = $region28
        $region27: #{probability_autoencoder_fwd.1} parent=23 // pred_region
          %s179 = sand.u32 %s31, 1
          %s180 = scalar_lea.sflag [#allocation3], %s179
          %s181 = sand.u32 %s31, 1
          %s182 = smul.addr %s181, 8
          %s183 = scalar_lea.vmem [#allocation2], %s182
          %s185 = ssub.s32 128, 128
          %186 = vsyncadd %s180, %s185
          %s187 = smul.addr %s21, 128
          %s188 = scalar_lea.hbm %s0, %s187
          %s190 = sshll.u32 %s183, 4
          %s191 = int_to_ptr.vmem [resolvable:$true] %s190
          %193 = dma.hbm_to_vmem [thread:$0]  %s188, 128, %s191, %s180
        $region28: #{probability_autoencoder_fwd.1} parent=23 // pred_fallthru
          _
      $region24: #{probability_autoencoder_fwd.1} parent=5 // pred_fallthru
        _
      %p194 = scmp.le.s32.totalorder 1, %s21
      %p195 = scmp.lt.s32.totalorder %s21, 3
      %p196 = pnand %p194, %p195
      %p197 = pneg %p196
      // Predicated region
      $region29: #{probability_autoencoder_fwd.1} parent=5 // pred_check
        _
      $region30: #{probability_autoencoder_fwd.1} parent=5 // pred_check_branch
        %199 = sbr.rel (%p196) target = $region32
      $region31: #{probability_autoencoder_fwd.1} parent=5 // pred_region
        %s200 = ssub.s32 %s21, 1
        %s201 = sand.u32 %s34, 1
        %s202 = scalar_lea.sflag [#allocation3], %s201
        %s203 = sand.u32 %s34, 1
        %s204 = smul.addr %s203, 8
        %s205 = scalar_lea.vmem [#allocation2], %s204
        // Predicated region
        $region33: #{probability_autoencoder_fwd.1} parent=31 // pred_check
          %p206 = pneg %p47
        $region34: #{probability_autoencoder_fwd.1} parent=31 // pred_check_branch
          %208 = sbr.rel (%p206) target = $region36
        $region35: #{probability_autoencoder_fwd.1} parent=31 // pred_region
          %209 = dma.done %s202, 128
        $region36: #{probability_autoencoder_fwd.1} parent=31 // pred_fallthru
          _
        // Predicated region
        $region37: #{probability_autoencoder_fwd.1} parent=31 // pred_check
          %p210 = pneg %p68
        $region38: #{probability_autoencoder_fwd.1} parent=31 // pred_check_branch
          %212 = sbr.rel (%p210) target = $region40
        $region39: #{probability_autoencoder_fwd.1} parent=31 // pred_region
          %213 = dma.done [#allocation6], 6144
        $region40: #{probability_autoencoder_fwd.1} parent=31 // pred_fallthru
          _
        %s214 = sand.u32 %s34, 1
        %s215 = scalar_lea.sflag [#allocation3], %s214
        %s216 = sand.u32 %s34, 1
        %s217 = smul.addr %s216, 8
        %s218 = scalar_lea.vmem [#allocation2], %s217
        %p219 = pneg %p47
        %p220 = pneg %p44
        %p221 = pneg %p68
        %p222 = pneg %p65
        %p223 = pneg %p89
        %p224 = pneg %p86
        %p225 = pneg %p115
        %p226 = pneg %p112
        %s227 = sand.u32 %s102, 1
        %s228 = scalar_lea.sflag [#allocation4], %s227
        %s229 = sand.u32 %s102, 1
        %s230 = smul.addr %s229, 8
        %s231 = scalar_lea.vmem [#allocation7], %s230
        %p232 = pneg %p141
        %p233 = pneg %p138
        %s234 = sand.u32 %s128, 1
        %s235 = scalar_lea.sflag [#allocation9], %s234
        %s236 = sand.u32 %s128, 1
        %s237 = smul.addr %s236, 8
        %s238 = scalar_lea.vmem [#allocation8], %s237
        %v240 = vld [vmem:[%s205] sm:$0xff]
        %v241 = vpack.c.bf16 %v240, %v240
        %v242 = vld [vmem:[#allocation5] sm:$0xf]
        %v243 = vld [vmem:[#allocation5 + $0x4] sm:$0xf]
        %v244 = vld [vmem:[#allocation5 + $0x8] sm:$0xf]
        %v245 = vld [vmem:[#allocation5 + $0xc] sm:$0xf]
        %v246 = vld [vmem:[#allocation5 + $0x10] sm:$0xf]
        %v247 = vld [vmem:[#allocation5 + $0x14] sm:$0xf]
        %v248 = vld [vmem:[#allocation5 + $0x18] sm:$0xf]
        %v249 = vld [vmem:[#allocation5 + $0x1c] sm:$0xf]
        %v250 = vld [vmem:[#allocation5 + $0x20] sm:$0xf]
        %v251 = vld [vmem:[#allocation5 + $0x24] sm:$0xf]
        %v252 = vld [vmem:[#allocation5 + $0x28] sm:$0xf]
        %v253 = vld [vmem:[#allocation5 + $0x2c] sm:$0xf]
        %v254 = vld [vmem:[#allocation5 + $0x30] sm:$0xf]
        %v255 = vld [vmem:[#allocation5 + $0x34] sm:$0xf]
        %v256 = vld [vmem:[#allocation5 + $0x38] sm:$0xf]
        %v257 = vld [vmem:[#allocation5 + $0x3c] sm:$0xf]
        %v258 = vld [vmem:[%s2] sm:$0x1]
        %v260 = vlaneseq
        %v261 = vshrl.u32 %v260, 7
        %v262 = vsub.s32 0, %v261
        %v263 = vrot.slane %v258, %v262
        %v281 = vunpack.c.l.b16 %v242
        %v282 = vunpack.c.l.b16 %v243
        %v283 = vunpack.c.l.b16 %v244
        %v284 = vunpack.c.l.b16 %v245
        %v285 = vunpack.c.l.b16 %v246
        %v286 = vunpack.c.l.b16 %v247
        %v287 = vunpack.c.l.b16 %v248
        %v288 = vunpack.c.l.b16 %v249
        %v289 = vunpack.c.l.b16 %v250
        %v290 = vunpack.c.l.b16 %v251
        %v291 = vunpack.c.l.b16 %v252
        %v292 = vunpack.c.l.b16 %v253
        %v293 = vunpack.c.l.b16 %v254
        %v294 = vunpack.c.l.b16 %v255
        %v295 = vunpack.c.l.b16 %v256
        %v296 = vunpack.c.l.b16 %v257
        %v297 = vpack.c.b16 %v282, %v281
        %v298 = vpack.c.b16 %v284, %v283
        %v299 = vpack.c.b16 %v286, %v285
        %v300 = vpack.c.b16 %v288, %v287
        %v301 = vpack.c.b16 %v290, %v289
        %v302 = vpack.c.b16 %v292, %v291
        %v303 = vpack.c.b16 %v294, %v293
        %v304 = vpack.c.b16 %v296, %v295
        %313 = vmatprep.subr.bf16.mxu0 0
        %314 = vmatpush1.bf16.msra.mxu0 %v297
        %315 = vmatprep.subr.bf16.mxu0 0
        %316 = vmatpush1.bf16.msra.mxu0 %v298
        %317 = vmatprep.subr.bf16.mxu0 0
        %318 = vmatpush1.bf16.msra.mxu0 %v299
        %319 = vmatprep.subr.bf16.mxu0 0
        %320 = vmatpush1.bf16.msra.mxu0 %v300
        %321 = vmatprep.subr.bf16.mxu0 0
        %322 = vmatpush1.bf16.msra.mxu0 %v301
        %323 = vmatprep.subr.bf16.mxu0 0
        %324 = vmatpush1.bf16.msra.mxu0 %v302
        %325 = vmatprep.subr.bf16.mxu0 0
        %326 = vmatpush1.bf16.msra.mxu0 %v303
        %327 = vmatprep.subr.bf16.mxu0 0
        %328 = vmatpush1.bf16.msra.mxu0 %v304
        %329 = vmatprep.subr.bf16.mxu0 0
        %330 = vmatpush1.bf16.msra.mxu0 0
        %331 = vmatprep.subr.bf16.mxu0 0
        %332 = vmatpush1.bf16.msra.mxu0 0
        %333 = vmatprep.subr.bf16.mxu0 0
        %334 = vmatpush1.bf16.msra.mxu0 0
        %335 = vmatprep.subr.bf16.mxu0 0
        %336 = vmatpush1.bf16.msra.mxu0 0
        %337 = vmatprep.subr.bf16.mxu0 0
        %338 = vmatpush1.bf16.msra.mxu0 0
        %339 = vmatprep.subr.bf16.mxu0 0
        %340 = vmatpush1.bf16.msra.mxu0 0
        %341 = vmatprep.subr.bf16.mxu0 0
        %342 = vmatpush1.bf16.msra.mxu0 0
        %343 = vmatprep.subr.bf16.mxu0 0
        %344 = vmatpush1.bf16.msra.mxu0 0
        %345 = vmatprep.mubr.bf16.mxu0 0
        %346 = vmatmul.mubr.bf16.gmra.mrb[0].mxu0 %v241
        %v347 = vpop.f32.mrb[0].mxu0
        %v348 = vadd.f32 %v263, %v347
        %v349 = vpop.f32.mrb[0].mxu0
        %v350 = vpop.f32.mrb[0].mxu0
        %v351 = vpop.f32.mrb[0].mxu0
        %352 = vdwg.mxu0
        %v353 = vmax.f32 %v348, 0.0
        %v354 = vpack.c.bf16 %v353, %v353
        %s355 = scalar_lea.vmem [#allocation5], 64
        %v356 = vld [vmem:[%s355] sm:$0xf]
        %v357 = vld [vmem:[%s355 + $0x4] sm:$0xf]
        %v358 = vld [vmem:[%s355 + $0x8] sm:$0xf]
        %v359 = vld [vmem:[%s355 + $0xc] sm:$0xf]
        %v360 = vld [vmem:[%s355 + $0x10] sm:$0xf]
        %v361 = vld [vmem:[%s355 + $0x14] sm:$0xf]
        %v362 = vld [vmem:[%s355 + $0x18] sm:$0xf]
        %v363 = vld [vmem:[%s355 + $0x1c] sm:$0xf]
        %v364 = vld [vmem:[%s355 + $0x20] sm:$0xf]
        %v365 = vld [vmem:[%s355 + $0x24] sm:$0xf]
        %v366 = vld [vmem:[%s355 + $0x28] sm:$0xf]
        %v367 = vld [vmem:[%s355 + $0x2c] sm:$0xf]
        %v368 = vld [vmem:[%s355 + $0x30] sm:$0xf]
        %v369 = vld [vmem:[%s355 + $0x34] sm:$0xf]
        %v370 = vld [vmem:[%s355 + $0x38] sm:$0xf]
        %v371 = vld [vmem:[%s355 + $0x3c] sm:$0xf]
        %s372 = scalar_lea.vmem %s2, 1
        %v373 = vld [vmem:[%s372] sm:$0x1]
        %v375 = vlaneseq
        %v376 = vshrl.u32 %v375, 7
        %v377 = vsub.s32 0, %v376
        %v378 = vrot.slane %v373, %v377
        %v396 = vunpack.c.l.b16 %v356
        %v397 = vunpack.c.l.b16 %v357
        %v398 = vunpack.c.l.b16 %v358
        %v399 = vunpack.c.l.b16 %v359
        %v400 = vunpack.c.l.b16 %v360
        %v401 = vunpack.c.l.b16 %v361
        %v402 = vunpack.c.l.b16 %v362
        %v403 = vunpack.c.l.b16 %v363
        %v404 = vunpack.c.l.b16 %v364
        %v405 = vunpack.c.l.b16 %v365
        %v406 = vunpack.c.l.b16 %v366
        %v407 = vunpack.c.l.b16 %v367
        %v408 = vunpack.c.l.b16 %v368
        %v409 = vunpack.c.l.b16 %v369
        %v410 = vunpack.c.l.b16 %v370
        %v411 = vunpack.c.l.b16 %v371
        %v412 = vpack.c.b16 %v397, %v396
        %v413 = vpack.c.b16 %v399, %v398
        %v414 = vpack.c.b16 %v401, %v400
        %v415 = vpack.c.b16 %v403, %v402
        %v416 = vpack.c.b16 %v405, %v404
        %v417 = vpack.c.b16 %v407, %v406
        %v418 = vpack.c.b16 %v409, %v408
        %v419 = vpack.c.b16 %v411, %v410
        %428 = vmatprep.subr.bf16.mxu0 0
        %429 = vmatpush1.bf16.msra.mxu0 %v412
        %430 = vmatprep.subr.bf16.mxu0 0
        %431 = vmatpush1.bf16.msra.mxu0 %v413
        %432 = vmatprep.subr.bf16.mxu0 0
        %433 = vmatpush1.bf16.msra.mxu0 %v414
        %434 = vmatprep.subr.bf16.mxu0 0
        %435 = vmatpush1.bf16.msra.mxu0 %v415
        %436 = vmatprep.subr.bf16.mxu0 0
        %437 = vmatpush1.bf16.msra.mxu0 %v416
        %438 = vmatprep.subr.bf16.mxu0 0
        %439 = vmatpush1.bf16.msra.mxu0 %v417
        %440 = vmatprep.subr.bf16.mxu0 0
        %441 = vmatpush1.bf16.msra.mxu0 %v418
        %442 = vmatprep.subr.bf16.mxu0 0
        %443 = vmatpush1.bf16.msra.mxu0 %v419
        %444 = vmatprep.subr.bf16.mxu0 0
        %445 = vmatpush1.bf16.msra.mxu0 0
        %446 = vmatprep.subr.bf16.mxu0 0
        %447 = vmatpush1.bf16.msra.mxu0 0
        %448 = vmatprep.subr.bf16.mxu0 0
        %449 = vmatpush1.bf16.msra.mxu0 0
        %450 = vmatprep.subr.bf16.mxu0 0
        %451 = vmatpush1.bf16.msra.mxu0 0
        %452 = vmatprep.subr.bf16.mxu0 0
        %453 = vmatpush1.bf16.msra.mxu0 0
        %454 = vmatprep.subr.bf16.mxu0 0
        %455 = vmatpush1.bf16.msra.mxu0 0
        %456 = vmatprep.subr.bf16.mxu0 0
        %457 = vmatpush1.bf16.msra.mxu0 0
        %458 = vmatprep.subr.bf16.mxu0 0
        %459 = vmatpush1.bf16.msra.mxu0 0
        %460 = vmatprep.mubr.bf16.mxu0 0
        %461 = vmatmul.mubr.bf16.gmra.mrb[0].mxu0 %v354
        %v462 = vpop.f32.mrb[0].mxu0
        %v463 = vadd.f32 %v378, %v462
        %v464 = vpop.f32.mrb[0].mxu0
        %v465 = vpop.f32.mrb[0].mxu0
        %v466 = vpop.f32.mrb[0].mxu0
        %467 = vdwg.mxu0
        %v468 = vmax.f32 %v463, 0.0
        %v469 = vpack.c.bf16 %v468, %v468
        %s470 = scalar_lea.vmem [#allocation5], 128
        %v471 = vld [vmem:[%s470] sm:$0xf]
        %v472 = vld [vmem:[%s470 + $0x4] sm:$0xf]
        %v473 = vld [vmem:[%s470 + $0x8] sm:$0xf]
        %v474 = vld [vmem:[%s470 + $0xc] sm:$0xf]
        %v475 = vld [vmem:[%s470 + $0x10] sm:$0xf]
        %v476 = vld [vmem:[%s470 + $0x14] sm:$0xf]
        %v477 = vld [vmem:[%s470 + $0x18] sm:$0xf]
        %v478 = vld [vmem:[%s470 + $0x1c] sm:$0xf]
        %v479 = vld [vmem:[%s470 + $0x20] sm:$0xf]
        %v480 = vld [vmem:[%s470 + $0x24] sm:$0xf]
        %v481 = vld [vmem:[%s470 + $0x28] sm:$0xf]
        %v482 = vld [vmem:[%s470 + $0x2c] sm:$0xf]
        %v483 = vld [vmem:[%s470 + $0x30] sm:$0xf]
        %v484 = vld [vmem:[%s470 + $0x34] sm:$0xf]
        %v485 = vld [vmem:[%s470 + $0x38] sm:$0xf]
        %v486 = vld [vmem:[%s470 + $0x3c] sm:$0xf]
        %s487 = scalar_lea.vmem %s2, 2
        %v488 = vld [vmem:[%s487] sm:$0x1]
        %v490 = vlaneseq
        %v491 = vshrl.u32 %v490, 7
        %v492 = vsub.s32 0, %v491
        %v493 = vrot.slane %v488, %v492
        %v511 = vunpack.c.l.b16 %v471
        %v512 = vunpack.c.l.b16 %v472
        %v513 = vunpack.c.l.b16 %v473
        %v514 = vunpack.c.l.b16 %v474
        %v515 = vunpack.c.l.b16 %v475
        %v516 = vunpack.c.l.b16 %v476
        %v517 = vunpack.c.l.b16 %v477
        %v518 = vunpack.c.l.b16 %v478
        %v519 = vunpack.c.l.b16 %v479
        %v520 = vunpack.c.l.b16 %v480
        %v521 = vunpack.c.l.b16 %v481
        %v522 = vunpack.c.l.b16 %v482
        %v523 = vunpack.c.l.b16 %v483
        %v524 = vunpack.c.l.b16 %v484
        %v525 = vunpack.c.l.b16 %v485
        %v526 = vunpack.c.l.b16 %v486
        %v527 = vpack.c.b16 %v512, %v511
        %v528 = vpack.c.b16 %v514, %v513
        %v529 = vpack.c.b16 %v516, %v515
        %v530 = vpack.c.b16 %v518, %v517
        %v531 = vpack.c.b16 %v520, %v519
        %v532 = vpack.c.b16 %v522, %v521
        %v533 = vpack.c.b16 %v524, %v523
        %v534 = vpack.c.b16 %v526, %v525
        %543 = vmatprep.subr.bf16.mxu0 0
        %544 = vmatpush1.bf16.msra.mxu0 %v527
        %545 = vmatprep.subr.bf16.mxu0 0
        %546 = vmatpush1.bf16.msra.mxu0 %v528
        %547 = vmatprep.subr.bf16.mxu0 0
        %548 = vmatpush1.bf16.msra.mxu0 %v529
        %549 = vmatprep.subr.bf16.mxu0 0
        %550 = vmatpush1.bf16.msra.mxu0 %v530
        %551 = vmatprep.subr.bf16.mxu0 0
        %552 = vmatpush1.bf16.msra.mxu0 %v531
        %553 = vmatprep.subr.bf16.mxu0 0
        %554 = vmatpush1.bf16.msra.mxu0 %v532
        %555 = vmatprep.subr.bf16.mxu0 0
        %556 = vmatpush1.bf16.msra.mxu0 %v533
        %557 = vmatprep.subr.bf16.mxu0 0
        %558 = vmatpush1.bf16.msra.mxu0 %v534
        %559 = vmatprep.subr.bf16.mxu0 0
        %560 = vmatpush1.bf16.msra.mxu0 0
        %561 = vmatprep.subr.bf16.mxu0 0
        %562 = vmatpush1.bf16.msra.mxu0 0
        %563 = vmatprep.subr.bf16.mxu0 0
        %564 = vmatpush1.bf16.msra.mxu0 0
        %565 = vmatprep.subr.bf16.mxu0 0
        %566 = vmatpush1.bf16.msra.mxu0 0
        %567 = vmatprep.subr.bf16.mxu0 0
        %568 = vmatpush1.bf16.msra.mxu0 0
        %569 = vmatprep.subr.bf16.mxu0 0
        %570 = vmatpush1.bf16.msra.mxu0 0
        %571 = vmatprep.subr.bf16.mxu0 0
        %572 = vmatpush1.bf16.msra.mxu0 0
        %573 = vmatprep.subr.bf16.mxu0 0
        %574 = vmatpush1.bf16.msra.mxu0 0
        %575 = vmatprep.mubr.bf16.mxu0 0
        %576 = vmatmul.mubr.bf16.gmra.mrb[0].mxu0 %v469
        %v577 = vpop.f32.mrb[0].mxu0
        %v578 = vadd.f32 %v493, %v577
        %v579 = vpop.f32.mrb[0].mxu0
        %v580 = vpop.f32.mrb[0].mxu0
        %v581 = vpop.f32.mrb[0].mxu0
        %582 = vdwg.mxu0
        %vm583 = vcmask 261120
        %584 = vst.msk [vmem:[%s238] sm:$0xff] %vm583, %v578
        %v585 = vpack.c.bf16 %v578, %v578
        %s586 = scalar_lea.vmem [#allocation5], 192
        %v587 = vld [vmem:[%s586] sm:$0xf]
        %v588 = vld [vmem:[%s586 + $0x4] sm:$0xf]
        %v589 = vld [vmem:[%s586 + $0x8] sm:$0xf]
        %v590 = vld [vmem:[%s586 + $0xc] sm:$0xf]
        %v591 = vld [vmem:[%s586 + $0x10] sm:$0xf]
        %v592 = vld [vmem:[%s586 + $0x14] sm:$0xf]
        %v593 = vld [vmem:[%s586 + $0x18] sm:$0xf]
        %v594 = vld [vmem:[%s586 + $0x1c] sm:$0xf]
        %v595 = vld [vmem:[%s586 + $0x20] sm:$0xf]
        %v596 = vld [vmem:[%s586 + $0x24] sm:$0xf]
        %v597 = vld [vmem:[%s586 + $0x28] sm:$0xf]
        %v598 = vld [vmem:[%s586 + $0x2c] sm:$0xf]
        %v599 = vld [vmem:[%s586 + $0x30] sm:$0xf]
        %v600 = vld [vmem:[%s586 + $0x34] sm:$0xf]
        %v601 = vld [vmem:[%s586 + $0x38] sm:$0xf]
        %v602 = vld [vmem:[%s586 + $0x3c] sm:$0xf]
        %s603 = scalar_lea.vmem %s2, 3
        %v604 = vld [vmem:[%s603] sm:$0x1]
        %v606 = vlaneseq
        %v607 = vshrl.u32 %v606, 7
        %v608 = vsub.s32 0, %v607
        %v609 = vrot.slane %v604, %v608
        %v627 = vunpack.c.l.b16 %v587
        %v628 = vunpack.c.l.b16 %v588
        %v629 = vunpack.c.l.b16 %v589
        %v630 = vunpack.c.l.b16 %v590
        %v631 = vunpack.c.l.b16 %v591
        %v632 = vunpack.c.l.b16 %v592
        %v633 = vunpack.c.l.b16 %v593
        %v634 = vunpack.c.l.b16 %v594
        %v635 = vunpack.c.l.b16 %v595
        %v636 = vunpack.c.l.b16 %v596
        %v637 = vunpack.c.l.b16 %v597
        %v638 = vunpack.c.l.b16 %v598
        %v639 = vunpack.c.l.b16 %v599
        %v640 = vunpack.c.l.b16 %v600
        %v641 = vunpack.c.l.b16 %v601
        %v642 = vunpack.c.l.b16 %v602
        %v643 = vpack.c.b16 %v628, %v627
        %v644 = vpack.c.b16 %v630, %v629
        %v645 = vpack.c.b16 %v632, %v631
        %v646 = vpack.c.b16 %v634, %v633
        %v647 = vpack.c.b16 %v636, %v635
        %v648 = vpack.c.b16 %v638, %v637
        %v649 = vpack.c.b16 %v640, %v639
        %v650 = vpack.c.b16 %v642, %v641
        %659 = vmatprep.subr.bf16.mxu0 0
        %660 = vmatpush1.bf16.msra.mxu0 %v643
        %661 = vmatprep.subr.bf16.mxu0 0
        %662 = vmatpush1.bf16.msra.mxu0 %v644
        %663 = vmatprep.subr.bf16.mxu0 0
        %664 = vmatpush1.bf16.msra.mxu0 %v645
        %665 = vmatprep.subr.bf16.mxu0 0
        %666 = vmatpush1.bf16.msra.mxu0 %v646
        %667 = vmatprep.subr.bf16.mxu0 0
        %668 = vmatpush1.bf16.msra.mxu0 %v647
        %669 = vmatprep.subr.bf16.mxu0 0
        %670 = vmatpush1.bf16.msra.mxu0 %v648
        %671 = vmatprep.subr.bf16.mxu0 0
        %672 = vmatpush1.bf16.msra.mxu0 %v649
        %673 = vmatprep.subr.bf16.mxu0 0
        %674 = vmatpush1.bf16.msra.mxu0 %v650
        %675 = vmatprep.subr.bf16.mxu0 0
        %676 = vmatpush1.bf16.msra.mxu0 0
        %677 = vmatprep.subr.bf16.mxu0 0
        %678 = vmatpush1.bf16.msra.mxu0 0
        %679 = vmatprep.subr.bf16.mxu0 0
        %680 = vmatpush1.bf16.msra.mxu0 0
        %681 = vmatprep.subr.bf16.mxu0 0
        %682 = vmatpush1.bf16.msra.mxu0 0
        %683 = vmatprep.subr.bf16.mxu0 0
        %684 = vmatpush1.bf16.msra.mxu0 0
        %685 = vmatprep.subr.bf16.mxu0 0
        %686 = vmatpush1.bf16.msra.mxu0 0
        %687 = vmatprep.subr.bf16.mxu0 0
        %688 = vmatpush1.bf16.msra.mxu0 0
        %689 = vmatprep.subr.bf16.mxu0 0
        %690 = vmatpush1.bf16.msra.mxu0 0
        %691 = vmatprep.mubr.bf16.mxu0 0
        %692 = vmatmul.mubr.bf16.gmra.mrb[0].mxu0 %v585
        %v693 = vpop.f32.mrb[0].mxu0
        %v694 = vadd.f32 %v609, %v693
        %v695 = vpop.f32.mrb[0].mxu0
        %v696 = vpop.f32.mrb[0].mxu0
        %v697 = vpop.f32.mrb[0].mxu0
        %698 = vdwg.mxu0
        %v699 = vmax.f32 %v694, 0.0
        %v700 = vpack.c.bf16 %v699, %v699
        %s701 = scalar_lea.vmem [#allocation5], 256
        %v702 = vld [vmem:[%s701] sm:$0xf]
        %v703 = vld [vmem:[%s701 + $0x4] sm:$0xf]
        %v704 = vld [vmem:[%s701 + $0x8] sm:$0xf]
        %v705 = vld [vmem:[%s701 + $0xc] sm:$0xf]
        %v706 = vld [vmem:[%s701 + $0x10] sm:$0xf]
        %v707 = vld [vmem:[%s701 + $0x14] sm:$0xf]
        %v708 = vld [vmem:[%s701 + $0x18] sm:$0xf]
        %v709 = vld [vmem:[%s701 + $0x1c] sm:$0xf]
        %v710 = vld [vmem:[%s701 + $0x20] sm:$0xf]
        %v711 = vld [vmem:[%s701 + $0x24] sm:$0xf]
        %v712 = vld [vmem:[%s701 + $0x28] sm:$0xf]
        %v713 = vld [vmem:[%s701 + $0x2c] sm:$0xf]
        %v714 = vld [vmem:[%s701 + $0x30] sm:$0xf]
        %v715 = vld [vmem:[%s701 + $0x34] sm:$0xf]
        %v716 = vld [vmem:[%s701 + $0x38] sm:$0xf]
        %v717 = vld [vmem:[%s701 + $0x3c] sm:$0xf]
        %s718 = scalar_lea.vmem %s2, 4
        %v719 = vld [vmem:[%s718] sm:$0x1]
        %v721 = vlaneseq
        %v722 = vshrl.u32 %v721, 7
        %v723 = vsub.s32 0, %v722
        %v724 = vrot.slane %v719, %v723
        %v742 = vunpack.c.l.b16 %v702
        %v743 = vunpack.c.l.b16 %v703
        %v744 = vunpack.c.l.b16 %v704
        %v745 = vunpack.c.l.b16 %v705
        %v746 = vunpack.c.l.b16 %v706
        %v747 = vunpack.c.l.b16 %v707
        %v748 = vunpack.c.l.b16 %v708
        %v749 = vunpack.c.l.b16 %v709
        %v750 = vunpack.c.l.b16 %v710
        %v751 = vunpack.c.l.b16 %v711
        %v752 = vunpack.c.l.b16 %v712
        %v753 = vunpack.c.l.b16 %v713
        %v754 = vunpack.c.l.b16 %v714
        %v755 = vunpack.c.l.b16 %v715
        %v756 = vunpack.c.l.b16 %v716
        %v757 = vunpack.c.l.b16 %v717
        %v758 = vpack.c.b16 %v743, %v742
        %v759 = vpack.c.b16 %v745, %v744
        %v760 = vpack.c.b16 %v747, %v746
        %v761 = vpack.c.b16 %v749, %v748
        %v762 = vpack.c.b16 %v751, %v750
        %v763 = vpack.c.b16 %v753, %v752
        %v764 = vpack.c.b16 %v755, %v754
        %v765 = vpack.c.b16 %v757, %v756
        %774 = vmatprep.subr.bf16.mxu0 0
        %775 = vmatpush1.bf16.msra.mxu0 %v758
        %776 = vmatprep.subr.bf16.mxu0 0
        %777 = vmatpush1.bf16.msra.mxu0 %v759
        %778 = vmatprep.subr.bf16.mxu0 0
        %779 = vmatpush1.bf16.msra.mxu0 %v760
        %780 = vmatprep.subr.bf16.mxu0 0
        %781 = vmatpush1.bf16.msra.mxu0 %v761
        %782 = vmatprep.subr.bf16.mxu0 0
        %783 = vmatpush1.bf16.msra.mxu0 %v762
        %784 = vmatprep.subr.bf16.mxu0 0
        %785 = vmatpush1.bf16.msra.mxu0 %v763
        %786 = vmatprep.subr.bf16.mxu0 0
        %787 = vmatpush1.bf16.msra.mxu0 %v764
        %788 = vmatprep.subr.bf16.mxu0 0
        %789 = vmatpush1.bf16.msra.mxu0 %v765
        %790 = vmatprep.subr.bf16.mxu0 0
        %791 = vmatpush1.bf16.msra.mxu0 0
        %792 = vmatprep.subr.bf16.mxu0 0
        %793 = vmatpush1.bf16.msra.mxu0 0
        %794 = vmatprep.subr.bf16.mxu0 0
        %795 = vmatpush1.bf16.msra.mxu0 0
        %796 = vmatprep.subr.bf16.mxu0 0
        %797 = vmatpush1.bf16.msra.mxu0 0
        %798 = vmatprep.subr.bf16.mxu0 0
        %799 = vmatpush1.bf16.msra.mxu0 0
        %800 = vmatprep.subr.bf16.mxu0 0
        %801 = vmatpush1.bf16.msra.mxu0 0
        %802 = vmatprep.subr.bf16.mxu0 0
        %803 = vmatpush1.bf16.msra.mxu0 0
        %804 = vmatprep.subr.bf16.mxu0 0
        %805 = vmatpush1.bf16.msra.mxu0 0
        %806 = vmatprep.mubr.bf16.mxu0 0
        %807 = vmatmul.mubr.bf16.gmra.mrb[0].mxu0 %v700
        %v808 = vpop.f32.mrb[0].mxu0
        %v809 = vadd.f32 %v724, %v808
        %v810 = vpop.f32.mrb[0].mxu0
        %v811 = vpop.f32.mrb[0].mxu0
        %v812 = vpop.f32.mrb[0].mxu0
        %813 = vdwg.mxu0
        %v814 = vmax.f32 %v809, 0.0
        %v815 = vpack.c.bf16 %v814, %v814
        %s816 = scalar_lea.vmem [#allocation5], 320
        %v817 = vld [vmem:[%s816] sm:$0xf]
        %v818 = vld [vmem:[%s816 + $0x4] sm:$0xf]
        %v819 = vld [vmem:[%s816 + $0x8] sm:$0xf]
        %v820 = vld [vmem:[%s816 + $0xc] sm:$0xf]
        %v821 = vld [vmem:[%s816 + $0x10] sm:$0xf]
        %v822 = vld [vmem:[%s816 + $0x14] sm:$0xf]
        %v823 = vld [vmem:[%s816 + $0x18] sm:$0xf]
        %v824 = vld [vmem:[%s816 + $0x1c] sm:$0xf]
        %v825 = vld [vmem:[%s816 + $0x20] sm:$0xf]
        %v826 = vld [vmem:[%s816 + $0x24] sm:$0xf]
        %v827 = vld [vmem:[%s816 + $0x28] sm:$0xf]
        %v828 = vld [vmem:[%s816 + $0x2c] sm:$0xf]
        %v829 = vld [vmem:[%s816 + $0x30] sm:$0xf]
        %v830 = vld [vmem:[%s816 + $0x34] sm:$0xf]
        %v831 = vld [vmem:[%s816 + $0x38] sm:$0xf]
        %v832 = vld [vmem:[%s816 + $0x3c] sm:$0xf]
        %s833 = scalar_lea.vmem %s2, 5
        %v834 = vld [vmem:[%s833] sm:$0x1]
        %v836 = vlaneseq
        %v837 = vshrl.u32 %v836, 7
        %v838 = vsub.s32 0, %v837
        %v839 = vrot.slane %v834, %v838
        %v857 = vunpack.c.l.b16 %v817
        %v858 = vunpack.c.l.b16 %v818
        %v859 = vunpack.c.l.b16 %v819
        %v860 = vunpack.c.l.b16 %v820
        %v861 = vunpack.c.l.b16 %v821
        %v862 = vunpack.c.l.b16 %v822
        %v863 = vunpack.c.l.b16 %v823
        %v864 = vunpack.c.l.b16 %v824
        %v865 = vunpack.c.l.b16 %v825
        %v866 = vunpack.c.l.b16 %v826
        %v867 = vunpack.c.l.b16 %v827
        %v868 = vunpack.c.l.b16 %v828
        %v869 = vunpack.c.l.b16 %v829
        %v870 = vunpack.c.l.b16 %v830
        %v871 = vunpack.c.l.b16 %v831
        %v872 = vunpack.c.l.b16 %v832
        %v873 = vpack.c.b16 %v858, %v857
        %v874 = vpack.c.b16 %v860, %v859
        %v875 = vpack.c.b16 %v862, %v861
        %v876 = vpack.c.b16 %v864, %v863
        %v877 = vpack.c.b16 %v866, %v865
        %v878 = vpack.c.b16 %v868, %v867
        %v879 = vpack.c.b16 %v870, %v869
        %v880 = vpack.c.b16 %v872, %v871
        %889 = vmatprep.subr.bf16.mxu0 0
        %890 = vmatpush1.bf16.msra.mxu0 %v873
        %891 = vmatprep.subr.bf16.mxu0 0
        %892 = vmatpush1.bf16.msra.mxu0 %v874
        %893 = vmatprep.subr.bf16.mxu0 0
        %894 = vmatpush1.bf16.msra.mxu0 %v875
        %895 = vmatprep.subr.bf16.mxu0 0
        %896 = vmatpush1.bf16.msra.mxu0 %v876
        %897 = vmatprep.subr.bf16.mxu0 0
        %898 = vmatpush1.bf16.msra.mxu0 %v877
        %899 = vmatprep.subr.bf16.mxu0 0
        %900 = vmatpush1.bf16.msra.mxu0 %v878
        %901 = vmatprep.subr.bf16.mxu0 0
        %902 = vmatpush1.bf16.msra.mxu0 %v879
        %903 = vmatprep.subr.bf16.mxu0 0
        %904 = vmatpush1.bf16.msra.mxu0 %v880
        %905 = vmatprep.subr.bf16.mxu0 0
        %906 = vmatpush1.bf16.msra.mxu0 0
        %907 = vmatprep.subr.bf16.mxu0 0
        %908 = vmatpush1.bf16.msra.mxu0 0
        %909 = vmatprep.subr.bf16.mxu0 0
        %910 = vmatpush1.bf16.msra.mxu0 0
        %911 = vmatprep.subr.bf16.mxu0 0
        %912 = vmatpush1.bf16.msra.mxu0 0
        %913 = vmatprep.subr.bf16.mxu0 0
        %914 = vmatpush1.bf16.msra.mxu0 0
        %915 = vmatprep.subr.bf16.mxu0 0
        %916 = vmatpush1.bf16.msra.mxu0 0
        %917 = vmatprep.subr.bf16.mxu0 0
        %918 = vmatpush1.bf16.msra.mxu0 0
        %919 = vmatprep.subr.bf16.mxu0 0
        %920 = vmatpush1.bf16.msra.mxu0 0
        %921 = vmatprep.mubr.bf16.mxu0 0
        %922 = vmatmul.mubr.bf16.gmra.mrb[0].mxu0 %v815
        %v923 = vpop.f32.mrb[0].mxu0
        %v924 = vadd.f32 %v839, %v923
        %v925 = vpop.f32.mrb[0].mxu0
        %v926 = vpop.f32.mrb[0].mxu0
        %v927 = vpop.f32.mrb[0].mxu0
        %928 = vdwg.mxu0
        %v929 = vxor.u32 %v924, 2147483648
        %v930 = vmul.f32 %v929, 1.442695
        %v931 = vpow.pop %v930
        %v932 = vadd.f32 %v931, 1.0
        %v933 = vrcp.pop %v932
        %v934 = vmul.f32 1.0, %v933
        %935 = vst [vmem:[%s231] sm:$0xff] %v934
        %s936 = sand.u32 %s102, 1
        %s937 = scalar_lea.sflag [#allocation4], %s936
        %s938 = sand.u32 %s102, 1
        %s939 = smul.addr %s938, 8
        %s940 = scalar_lea.vmem [#allocation7], %s939
        %s941 = sand.u32 %s128, 1
        %s942 = scalar_lea.sflag [#allocation9], %s941
        %s943 = sand.u32 %s128, 1
        %s944 = smul.addr %s943, 8
        %s945 = scalar_lea.vmem [#allocation8], %s944
        // Predicated region
        $region41: #{probability_autoencoder_fwd.1} parent=31 // pred_check
          %p946 = pneg %p112
        $region42: #{probability_autoencoder_fwd.1} parent=31 // pred_check_branch
          %948 = sbr.rel (%p946) target = $region44
        $region43: #{probability_autoencoder_fwd.1} parent=31 // pred_region
          %s950 = ssub.s32 128, 128
          %951 = vsyncadd %s937, %s950
          %s952 = smul.addr %s26, 128
          %s953 = scalar_lea.hbm %s3, %s952
          %s955 = sshll.u32 %s940, 4
          %s956 = int_to_ptr.vmem [resolvable:$true] %s955
          %958 = dma.vmem_to_hbm [thread:$0]  %s956, 128, %s953, %s937
        $region44: #{probability_autoencoder_fwd.1} parent=31 // pred_fallthru
          _
        // Predicated region
        $region45: #{probability_autoencoder_fwd.1} parent=31 // pred_check
          %p959 = pneg %p138
        $region46: #{probability_autoencoder_fwd.1} parent=31 // pred_check_branch
          %961 = sbr.rel (%p959) target = $region48
        $region47: #{probability_autoencoder_fwd.1} parent=31 // pred_region
          %s963 = ssub.s32 128, 128
          %964 = vsyncadd %s942, %s963
          %s965 = smul.addr %s26, 128
          %s966 = scalar_lea.hbm %s4, %s965
          %s968 = sshll.u32 %s945, 4
          %s969 = int_to_ptr.vmem [resolvable:$true] %s968
          %971 = dma.vmem_to_hbm [thread:$0]  %s969, 128, %s966, %s942
        $region48: #{probability_autoencoder_fwd.1} parent=31 // pred_fallthru
          _
      $region32: #{probability_autoencoder_fwd.1} parent=5 // pred_fallthru
        _
      %p972 = scmp.le.s32.totalorder 2, %s21
      // Predicated region
      $region49: #{probability_autoencoder_fwd.1} parent=5 // pred_check
        %p973 = pneg %p972
      $region50: #{probability_autoencoder_fwd.1} parent=5 // pred_check_branch
        %975 = sbr.rel (%p973) target = $region52
      $region51: #{probability_autoencoder_fwd.1} parent=5 // pred_region
        %s976 = ssub.s32 %s21, 2
        // Predicated region
        $region53: #{probability_autoencoder_fwd.1} parent=51 // pred_check
          %p977 = pneg %p118
        $region54: #{probability_autoencoder_fwd.1} parent=51 // pred_check_branch
          %979 = sbr.rel (%p977) target = $region56
        $region55: #{probability_autoencoder_fwd.1} parent=51 // pred_region
          %s980 = sand.u32 %s103, 1
          %s981 = scalar_lea.sflag [#allocation4], %s980
          %s982 = sand.u32 %s103, 1
          %s983 = smul.addr %s982, 8
          %s984 = scalar_lea.vmem [#allocation7], %s983
          %985 = dma.done %s981, 128
        $region56: #{probability_autoencoder_fwd.1} parent=51 // pred_fallthru
          _
        // Predicated region
        $region57: #{probability_autoencoder_fwd.1} parent=51 // pred_check
          %p986 = pneg %p144
        $region58: #{probability_autoencoder_fwd.1} parent=51 // pred_check_branch
          %988 = sbr.rel (%p986) target = $region60
        $region59: #{probability_autoencoder_fwd.1} parent=51 // pred_region
          %s989 = sand.u32 %s129, 1
          %s990 = scalar_lea.sflag [#allocation9], %s989
          %s991 = sand.u32 %s129, 1
          %s992 = smul.addr %s991, 8
          %s993 = scalar_lea.vmem [#allocation8], %s992
          %994 = dma.done %s990, 128
        $region60: #{probability_autoencoder_fwd.1} parent=51 // pred_fallthru
          _
      $region52: #{probability_autoencoder_fwd.1} parent=5 // pred_fallthru
        _
    $region6: #{probability_autoencoder_fwd.1} parent=1 // loop_footer
      %s25 = sadd.s32 1, %s21
    $region7: #{probability_autoencoder_fwd.1} parent=1 // loop_footer_branch
      %20 = sbr.rel target = $region3
    $region8: #{probability_autoencoder_fwd.1} parent=1 // loop_exit
      _
    %995 = vsyncpa [#allocation3], 1
    %s996 = scalar_lea.sflag [#allocation3], 1
    %997 = vsyncpa %s996, 1
    %998 = vsyncpa [#allocation6], 1
    %999 = vsyncpa [#allocation4], 1
    %s1000 = scalar_lea.sflag [#allocation4], 1
    %1001 = vsyncpa %s1000, 1
    %1002 = vsyncpa [#allocation9], 1
    %s1003 = scalar_lea.sflag [#allocation9], 1
    %1004 = vsyncpa %s1003, 1

</llo_original>
